<compile_context>
chip_gen: v5e
topology: v5e:2x2
jax: 0.10.0
libtpu: 0.0.40
codegen_flags: <defaults>
</compile_context>

<pallas_src>
import jax
import jax.numpy as jnp
from jax.experimental import pallas as pl
from jax.experimental.pallas import tpu as pltpu

DEFAULT_TB = 4096   # batch tile rows (sweet spot 2048-8192 depending on gen)
VMEM_LIMIT = 32 * 1024 * 1024   # explicit scoped-VMEM limit, safe on v5e/v6e/v7x


def mlp_kernel(x_ref,
               w1_ref, b1_ref,
               w2_ref, b2_ref,
               w3_ref, b3_ref,
               w4_ref, b4_ref,
               o_ref):
    """One batch tile of the full MLP: 4 MXU matmuls + VPU ReLUs.

    Accumulation is f32 (preferred_element_type); bias-add / ReLU in f32.
    The final (tb, 1) column is transposed to (1, tb) so the output store is a
    single contiguous lane-dense row (full-lane vst + contiguous DMA to HBM).
    Dropout layers are identity (eval mode).
    """
    cdt = w1_ref.dtype  # compute dtype for MXU operands (follows x dtype)

    h = jnp.dot(x_ref[...], w1_ref[...], preferred_element_type=jnp.float32)
    h = jnp.maximum(h + b1_ref[...], 0.0)                      # ReLU

    h = jnp.dot(h.astype(cdt), w2_ref[...], preferred_element_type=jnp.float32)
    h = jnp.maximum(h + b2_ref[...], 0.0)                      # ReLU (+Dropout=id)

    h = jnp.dot(h.astype(cdt), w3_ref[...], preferred_element_type=jnp.float32)
    h = jnp.maximum(h + b3_ref[...], 0.0)                      # ReLU (+Dropout=id)

    y = jnp.dot(h.astype(cdt), w4_ref[...], preferred_element_type=jnp.float32)  # (tb, 1)

    # Relayout batch from sublanes to lanes (XLU slot, has slack): (tb,1)->(1,tb)
    y_t = jnp.transpose(y)
    o_ref[...] = (y_t + b4_ref[...]).astype(o_ref.dtype)


def regression_mlp_forward(x, params, *, block_batch=DEFAULT_TB):
    """Gridded pallas_call: batch tiled + auto-pipelined, weights VMEM-resident.

    Compute dtype follows x.dtype (no wrapper-side cast pass); output dtype
    matches x.dtype. Returns shape (batch, 1).
    """
    (w1, b1), (w2, b2), (w3, b3), (w4, b4) = params
    batch, input_dim = x.shape
    cdt = x.dtype

    # Batch tile: multiple of 16 (also bf16-packing friendly), capped at
    # block_batch, and capped at ~batch/2 so the grid keeps >=2 steps whenever
    # possible (v7x megacore gets both TCs busy; no-op on v5e/v6e).
    half = -(-batch // 2)                                  # cdiv(batch, 2)
    tb = min(block_batch, max(16, ((half + 15) // 16) * 16))
    grid_b = pl.cdiv(batch, tb)

    # Tiny parameter arrays: cast weights to compute dtype, keep biases f32.
    ws = [w.astype(cdt) for w in (w1, w2, w3, w4)]
    bs = [b.astype(jnp.float32) for b in (b1, b2, b3, b4)]

    def resident(arr):
        # Full-array block, always block (0, 0): DMA'd once, stays in VMEM.
        return pl.BlockSpec(arr.shape, lambda i: (0, 0))

    out_dim = w4.shape[1]  # 1 for regression
    itemsize = jnp.dtype(cdt).itemsize
    flops = 2 * batch * (input_dim * 32 + 32 * 16 + 16 * 8 + 8 * out_dim)
    bytes_accessed = (batch * input_dim * itemsize                    # x read
                      + sum(w.size * itemsize for w in ws)            # weights (once)
                      + sum(b.size * 4 for b in bs)                   # biases (once)
                      + batch * itemsize)                             # output write

    y_tiles = pl.pallas_call(
        mlp_kernel,
        out_shape=jax.ShapeDtypeStruct((grid_b, 1, tb), cdt),
        grid=(grid_b,),
        in_specs=[pl.BlockSpec((tb, input_dim), lambda i: (i, 0)),
                  resident(ws[0]), resident(bs[0]),
                  resident(ws[1]), resident(bs[1]),
                  resident(ws[2]), resident(bs[2]),
                  resident(ws[3]), resident(bs[3])],
        # Lane-dense transposed output: one contiguous (1, tb) row per step.
        out_specs=pl.BlockSpec((None, 1, tb), lambda i: (i, 0, 0)),
        compiler_params=pltpu.CompilerParams(
            dimension_semantics=("parallel",),
            vmem_limit_bytes=VMEM_LIMIT),
        cost_estimate=pl.CostEstimate(flops=flops,
                                      transcendentals=0,
                                      bytes_accessed=bytes_accessed),
    )(x, ws[0], bs[0], ws[1], bs[1], ws[2], bs[2], ws[3], bs[3])

    # Flat (grid_b*tb,) -> drop the (discarded) ragged tail -> (batch, 1).
    return y_tiles.reshape(grid_b * tb)[:batch].reshape(batch, out_dim)


def init_params(key, input_dim):
    """Kaiming-normal (fan_in, gain=sqrt(2)) weights, zero biases — matches the
    PyTorch _initialize_weights(). Final layer has 1 output (regression)."""
    layer_dims = [input_dim, 32, 16, 8, 1]
    params = []
    for i in range(len(layer_dims) - 1):
        fan_in, fan_out = layer_dims[i], layer_dims[i + 1]
        key, sub = jax.random.split(key)
        std = (2.0 / fan_in) ** 0.5
        # stored as (in, out): transpose of PyTorch's (out, in) Linear weight
        w = std * jax.random.normal(sub, (fan_in, fan_out), dtype=jnp.float32)
        b = jnp.zeros((1, fan_out), dtype=jnp.float32)
        params.append((w, b))
    return params


def reference_forward(x, params):
    """Pure-JAX reference for correctness checking (eval-mode dropout)."""
    (w1, b1), (w2, b2), (w3, b3), (w4, b4) = params
    h = jnp.maximum(x @ w1 + b1, 0.0)
    h = jnp.maximum(h @ w2 + b2, 0.0)
    h = jnp.maximum(h @ w3 + b3, 0.0)
    return h @ w4 + b4


if __name__ == "__main__":
    input_dim = 20
    batch = 100   # not a multiple of the tile -> exercises ragged tail + 2-step grid

    key = jax.random.PRNGKey(0)
    key, xk = jax.random.split(key)
    x = jax.random.normal(xk, (batch, input_dim), dtype=jnp.float32)

    params = init_params(key, input_dim)
    y_ref = reference_forward(x, params)

    # f32 path: exact check vs pure-JAX reference.
    y = regression_mlp_forward(x, params)
    y = jax.block_until_ready(y)
    assert y.shape == (batch, 1)
    assert jnp.allclose(y, y_ref, atol=1e-4, rtol=1e-4), "mismatch vs JAX reference"

    # bf16 path: caller supplies bf16 x (no wrapper cast); loose tolerance check.
    x_bf16 = x.astype(jnp.bfloat16)
    y_bf16 = regression_mlp_forward(x_bf16, params)
    y_bf16 = jax.block_until_ready(y_bf16)
    assert y_bf16.shape == (batch, 1)
    assert bool(jnp.all(jnp.isfinite(y_bf16.astype(jnp.float32))))
    assert jnp.allclose(y_bf16.astype(jnp.float32), y_ref, atol=0.25, rtol=0.1), \
        "bf16 path diverged too far from f32 reference"

    print("KERNEL_OK")
</pallas_src>

<mosaic_0001>
module attributes {stable_mosaic.version = 11 : i64} {
  func.func @mlp_kernel(%arg0: i32, %arg1: memref<64x20xf32, #tpu.memory_space<vmem>>, %arg2: memref<20x32xf32, #tpu.memory_space<vmem>>, %arg3: memref<1x32xf32, #tpu.memory_space<vmem>>, %arg4: memref<32x16xf32, #tpu.memory_space<vmem>>, %arg5: memref<1x16xf32, #tpu.memory_space<vmem>>, %arg6: memref<16x8xf32, #tpu.memory_space<vmem>>, %arg7: memref<1x8xf32, #tpu.memory_space<vmem>>, %arg8: memref<8x1xf32, #tpu.memory_space<vmem>>, %arg9: memref<1x1xf32, #tpu.memory_space<vmem>>, %arg10: memref<1x1x64xf32, #tpu.memory_space<vmem>>) attributes {dimension_semantics = [#tpu.dimension_semantics<parallel>], iteration_bounds = array<i64: 2>, scalar_prefetch = 0 : i64, scratch_operands = 0 : i64, tpu.core_type = #tpu.core_type<tc>, window_params = [{transform_indices = @transform_0, window_bounds = array<i64: 64, 20>}, {pipeline_mode = #tpu.pipeline_mode<synchronous>, transform_indices = @transform_1, window_bounds = array<i64: 20, 32>}, {pipeline_mode = #tpu.pipeline_mode<synchronous>, transform_indices = @transform_2, window_bounds = array<i64: 1, 32>}, {pipeline_mode = #tpu.pipeline_mode<synchronous>, transform_indices = @transform_3, window_bounds = array<i64: 32, 16>}, {pipeline_mode = #tpu.pipeline_mode<synchronous>, transform_indices = @transform_4, window_bounds = array<i64: 1, 16>}, {pipeline_mode = #tpu.pipeline_mode<synchronous>, transform_indices = @transform_5, window_bounds = array<i64: 16, 8>}, {pipeline_mode = #tpu.pipeline_mode<synchronous>, transform_indices = @transform_6, window_bounds = array<i64: 1, 8>}, {pipeline_mode = #tpu.pipeline_mode<synchronous>, transform_indices = @transform_7, window_bounds = array<i64: 8, 1>}, {pipeline_mode = #tpu.pipeline_mode<synchronous>, transform_indices = @transform_8, window_bounds = array<i64: 1, 1>}, {transform_indices = @transform_9, window_bounds = array<i64: 1, 1, 64>}]} {
    %c0 = arith.constant 0 : index
    %c0_0 = arith.constant 0 : index
    %0 = vector.load %arg1[%c0, %c0_0] : memref<64x20xf32, #tpu.memory_space<vmem>>, vector<64x20xf32>
    %c0_1 = arith.constant 0 : index
    %c0_2 = arith.constant 0 : index
    %1 = vector.load %arg2[%c0_1, %c0_2] : memref<20x32xf32, #tpu.memory_space<vmem>>, vector<20x32xf32>
    %cst = arith.constant dense<0.000000e+00> : vector<64x32xf32>
    %2 = tpu.matmul %0, %1, %cst {dimension_numbers = #tpu.dot_dimension_numbers<[1], [0], [0], [1], [0, 0, 1, 1], [], []>} : vector<64x20xf32>, vector<20x32xf32>, vector<64x32xf32> -> vector<64x32xf32>
    %c0_3 = arith.constant 0 : index
    %c0_4 = arith.constant 0 : index
    %3 = vector.load %arg3[%c0_3, %c0_4] : memref<1x32xf32, #tpu.memory_space<vmem>>, vector<1x32xf32>
    %4 = vector.broadcast %3 : vector<1x32xf32> to vector<64x32xf32>
    %5 = arith.addf %2, %4 : vector<64x32xf32>
    %cst_5 = arith.constant 0.000000e+00 : f32
    %6 = vector.broadcast %cst_5 : f32 to vector<64x32xf32>
    %7 = arith.maximumf %5, %6 : vector<64x32xf32>
    %c0_6 = arith.constant 0 : index
    %c0_7 = arith.constant 0 : index
    %8 = vector.load %arg4[%c0_6, %c0_7] : memref<32x16xf32, #tpu.memory_space<vmem>>, vector<32x16xf32>
    %cst_8 = arith.constant dense<0.000000e+00> : vector<64x16xf32>
    %9 = tpu.matmul %7, %8, %cst_8 {dimension_numbers = #tpu.dot_dimension_numbers<[1], [0], [0], [1], [0, 0, 1, 1], [], []>} : vector<64x32xf32>, vector<32x16xf32>, vector<64x16xf32> -> vector<64x16xf32>
    %c0_9 = arith.constant 0 : index
    %c0_10 = arith.constant 0 : index
    %10 = vector.load %arg5[%c0_9, %c0_10] : memref<1x16xf32, #tpu.memory_space<vmem>>, vector<1x16xf32>
    %11 = vector.broadcast %10 : vector<1x16xf32> to vector<64x16xf32>
    %12 = arith.addf %9, %11 : vector<64x16xf32>
    %cst_11 = arith.constant 0.000000e+00 : f32
    %13 = vector.broadcast %cst_11 : f32 to vector<64x16xf32>
    %14 = arith.maximumf %12, %13 : vector<64x16xf32>
    %c0_12 = arith.constant 0 : index
    %c0_13 = arith.constant 0 : index
    %15 = vector.load %arg6[%c0_12, %c0_13] : memref<16x8xf32, #tpu.memory_space<vmem>>, vector<16x8xf32>
    %cst_14 = arith.constant dense<0.000000e+00> : vector<64x8xf32>
    %16 = tpu.matmul %14, %15, %cst_14 {dimension_numbers = #tpu.dot_dimension_numbers<[1], [0], [0], [1], [0, 0, 1, 1], [], []>} : vector<64x16xf32>, vector<16x8xf32>, vector<64x8xf32> -> vector<64x8xf32>
    %c0_15 = arith.constant 0 : index
    %c0_16 = arith.constant 0 : index
    %17 = vector.load %arg7[%c0_15, %c0_16] : memref<1x8xf32, #tpu.memory_space<vmem>>, vector<1x8xf32>
    %18 = vector.broadcast %17 : vector<1x8xf32> to vector<64x8xf32>
    %19 = arith.addf %16, %18 : vector<64x8xf32>
    %cst_17 = arith.constant 0.000000e+00 : f32
    %20 = vector.broadcast %cst_17 : f32 to vector<64x8xf32>
    %21 = arith.maximumf %19, %20 : vector<64x8xf32>
    %c0_18 = arith.constant 0 : index
    %c0_19 = arith.constant 0 : index
    %22 = vector.load %arg8[%c0_18, %c0_19] : memref<8x1xf32, #tpu.memory_space<vmem>>, vector<8x1xf32>
    %cst_20 = arith.constant dense<0.000000e+00> : vector<64x1xf32>
    %23 = tpu.matmul %21, %22, %cst_20 {dimension_numbers = #tpu.dot_dimension_numbers<[1], [0], [0], [1], [0, 0, 1, 1], [], []>} : vector<64x8xf32>, vector<8x1xf32>, vector<64x1xf32> -> vector<64x1xf32>
    %24 = tpu.transpose %23, [1, 0] : vector<64x1xf32> -> vector<1x64xf32>
    %c0_21 = arith.constant 0 : index
    %c0_22 = arith.constant 0 : index
    %25 = vector.load %arg9[%c0_21, %c0_22] : memref<1x1xf32, #tpu.memory_space<vmem>>, vector<1x1xf32>
    %26 = vector.broadcast %25 : vector<1x1xf32> to vector<1x64xf32>
    %27 = arith.addf %24, %26 : vector<1x64xf32>
    %c0_23 = arith.constant 0 : index
    %c0_24 = arith.constant 0 : index
    %c0_25 = arith.constant 0 : index
    %28 = vector.load %arg10[%c0_23, %c0_24, %c0_25] : memref<1x1x64xf32, #tpu.memory_space<vmem>>, vector<1x1x64xf32>
    %29 = vector.shape_cast %28 : vector<1x1x64xf32> to vector<1x64xf32>
    %30 = vector.shape_cast %27 : vector<1x64xf32> to vector<1x1x64xf32>
    tpu.vector_store %arg10[%c0_23, %c0_24, %c0_25], %30 {strides = array<i32>} : memref<1x1x64xf32, #tpu.memory_space<vmem>>, vector<1x1x64xf32>,
    return
  }
  func.func @transform_0(%arg0: i32) -> (i32, i32) {
    %c0_i32 = arith.constant 0 : i32
    %c0_i32_0 = arith.constant 0 : i32
    return %arg0, %c0_i32 : i32, i32
  }
  func.func @transform_1(%arg0: i32) -> (i32, i32) {
    %c0_i32 = arith.constant 0 : i32
    %c0_i32_0 = arith.constant 0 : i32
    %c0_i32_1 = arith.constant 0 : i32
    return %c0_i32, %c0_i32_0 : i32, i32
  }
  func.func @transform_2(%arg0: i32) -> (i32, i32) {
    %c0_i32 = arith.constant 0 : i32
    %c0_i32_0 = arith.constant 0 : i32
    %c0_i32_1 = arith.constant 0 : i32
    return %c0_i32, %c0_i32_0 : i32, i32
  }
  func.func @transform_3(%arg0: i32) -> (i32, i32) {
    %c0_i32 = arith.constant 0 : i32
    %c0_i32_0 = arith.constant 0 : i32
    %c0_i32_1 = arith.constant 0 : i32
    return %c0_i32, %c0_i32_0 : i32, i32
  }
  func.func @transform_4(%arg0: i32) -> (i32, i32) {
    %c0_i32 = arith.constant 0 : i32
    %c0_i32_0 = arith.constant 0 : i32
    %c0_i32_1 = arith.constant 0 : i32
    return %c0_i32, %c0_i32_0 : i32, i32
  }
  func.func @transform_5(%arg0: i32) -> (i32, i32) {
    %c0_i32 = arith.constant 0 : i32
    %c0_i32_0 = arith.constant 0 : i32
    %c0_i32_1 = arith.constant 0 : i32
    return %c0_i32, %c0_i32_0 : i32, i32
  }
  func.func @transform_6(%arg0: i32) -> (i32, i32) {
    %c0_i32 = arith.constant 0 : i32
    %c0_i32_0 = arith.constant 0 : i32
    %c0_i32_1 = arith.constant 0 : i32
    return %c0_i32, %c0_i32_0 : i32, i32
  }
  func.func @transform_7(%arg0: i32) -> (i32, i32) {
    %c0_i32 = arith.constant 0 : i32
    %c0_i32_0 = arith.constant 0 : i32
    %c0_i32_1 = arith.constant 0 : i32
    return %c0_i32, %c0_i32_0 : i32, i32
  }
  func.func @transform_8(%arg0: i32) -> (i32, i32) {
    %c0_i32 = arith.constant 0 : i32
    %c0_i32_0 = arith.constant 0 : i32
    %c0_i32_1 = arith.constant 0 : i32
    return %c0_i32, %c0_i32_0 : i32, i32
  }
  func.func @transform_9(%arg0: i32) -> (i32, i32, i32) {
    %c0_i32 = arith.constant 0 : i32
    %c0_i32_0 = arith.constant 0 : i32
    %c0_i32_1 = arith.constant 0 : i32
    return %arg0, %c0_i32, %c0_i32_0 : i32, i32, i32
  }
}

</mosaic_0001>

<llo_original>
// kernel: tpu_custom_call.1
$region0: #{tpu_custom_call.1}
  #allocation0 [shape = 'u32[]', space=smem, size = 0x4, offset = 0x4, fixed_abs, tag = 'smem constant byte address 0x4 - core index']
  #allocation1 [shape = 'u32[72,128]{1,0:T(1,128)}', space=vmem, size = 0x9000, scoped, tag = 'internal scratch']
  #allocation2 [shape = 'f32[1,1]{1,0:T(1,128)S(1)}', space=vmem, size = 0x200, scoped, tag = 'scoped memory for tpu_custom_call.1']
  %s0 = inlined_call_operand.vmem [shape: f32[100,20], index: 0, kind: input, shape index: {}]
  %s1 = inlined_call_operand.vmem [shape: f32[20,32], index: 1, kind: input, shape index: {}]
  %s2 = inlined_call_operand.vmem [shape: f32[1,32], index: 2, kind: input, shape index: {}]
  %s3 = inlined_call_operand.vmem [shape: f32[32,16], index: 3, kind: input, shape index: {}]
  %s4 = inlined_call_operand.vmem [shape: f32[1,16], index: 4, kind: input, shape index: {}]
  %s5 = inlined_call_operand.vmem [shape: f32[16,8], index: 5, kind: input, shape index: {}]
  %s6 = inlined_call_operand.vmem [shape: f32[1,8], index: 6, kind: input, shape index: {}]
  %s7 = inlined_call_operand.vmem [shape: f32[8,1], index: 7, kind: input, shape index: {}]
  %s8 = inlined_call_operand.<no memory space> [shape: f32[1,1], index: 8, kind: input, shape index: {}]
  %s9 = inlined_call_operand.hbm [shape: f32[2,1,64], index: 9, kind: output, shape index: {}]
  %s10 = sld [smem:[#allocation0]]
  $region69: #{tpu_custom_call.1} parent=0
    _
  %s12 = ssub.s32 1, %s10
  %s13 = scalar_select 0, %s12, %s10
  %v14 = vstv %s8
  %15 = vst [vmem:[#allocation2] sm:$0x1] %v14
  $region1: #{tpu_custom_call.1} parent=0
    #allocation3 [shape = 'u8[1024]{0}', space=vmem, size = 0x400, scoped, tag = 'output window, operand 0']
    #allocation4 [shape = 's32[2]{0}', space=sflag, size = 0x8, scoped, tag = 'scoped memory for tpu_custom_call.1']
    %16 = vsyncpa [#allocation4], 0
    %s17 = scalar_lea.sflag [#allocation4], 1
    %18 = vsyncpa %s17, 0
    loop: start=0, step=1, limit=4
    $region2: #{tpu_custom_call.1} parent=1 // loop_pre_header
      _
    $region3: #{tpu_custom_call.1} parent=1 // loop_header
      %s20 = sphi 0, %s24
      %p21 = scmp.ge.s32.totalorder %s20, 4
      %s30 = sphi 0, %s32
      %s33 = sphi 0, %s30
      %s34 = sphi 0, %s33
      %s50 = sphi 0, %s34
      %s54 = sphi 0, %s54
      %s56 = sphi 0, %s54
      %s57 = sphi 0, %s56
      %s71 = sphi 0, %s57
      %s75 = sphi 0, %s75
      %s77 = sphi 0, %s75
      %s78 = sphi 0, %s77
      %s92 = sphi 0, %s78
      %s96 = sphi 0, %s96
      %s98 = sphi 0, %s96
      %s99 = sphi 0, %s98
      %s113 = sphi 0, %s99
      %s117 = sphi 0, %s117
      %s119 = sphi 0, %s117
      %s120 = sphi 0, %s119
      %s134 = sphi 0, %s120
      %s138 = sphi 0, %s138
      %s140 = sphi 0, %s138
      %s141 = sphi 0, %s140
      %s155 = sphi 0, %s141
      %s159 = sphi 0, %s159
      %s161 = sphi 0, %s159
      %s162 = sphi 0, %s161
      %s176 = sphi 0, %s162
      %s180 = sphi 0, %s180
      %s182 = sphi 0, %s180
      %s183 = sphi 0, %s182
      %s197 = sphi 0, %s183
      %s201 = sphi 0, %s201
      %s203 = sphi 0, %s201
      %s204 = sphi 0, %s203
      %s218 = sphi 0, %s204
      %s224 = sphi 0, %s226
      %s227 = sphi 0, %s224
      %s228 = sphi 0, %s227
      %s244 = sphi 0, %s228
    $region4: #{tpu_custom_call.1} parent=1 // loop_header_branch
      %23 = sbr.rel (%p21) target = $region8
    $region5: #{tpu_custom_call.1} parent=1 // loop_body
      %s25 = ssub.s32 %s20, 1
      %s26 = ssub.s32 %s20, 2
      %s27 = sadd.s32 %s20, 1
      %s28 = ssub.s32 %s20, %s27
      %p29 = scmp.eq.s32.totalorder %s28, 0
      %s31 = sadd.s32 %s30, 1
      %s32 = scalar_select %p29, %s30, %s31
      %p35 = pneg %p29
      %p36 = scmp.eq.s32.totalorder %s20, 1
      %p37 = por %p35, %p36
      %p38 = scmp.ne.s32.totalorder %s30, %s33
      %p39 = scmp.eq.s32.totalorder %s20, 0
      %p40 = por %p38, %p39
      %p41 = scmp.ne.s32.totalorder %s30, %s33
      %p42 = scmp.eq.s32.totalorder %s25, 1
      %p43 = por %p41, %p42
      %p44 = scmp.ne.s32.totalorder %s33, %s34
      %p45 = scmp.eq.s32.totalorder %s25, 0
      %p46 = por %p44, %p45
      %p47 = scmp.ne.s32.totalorder %s33, %s34
      %p48 = scmp.eq.s32.totalorder %s26, 1
      %p49 = por %p47, %p48
      %p51 = scmp.ne.s32.totalorder %s34, %s50
      %p52 = scmp.eq.s32.totalorder %s26, 0
      %p53 = por %p51, %p52
      %s55 = sadd.s32 %s54, 1
      %p58 = scmp.eq.s32.totalorder %s20, 1
      %p59 = scmp.ne.s32.totalorder %s54, %s56
      %p60 = scmp.eq.s32.totalorder %s20, 0
      %p61 = por %p59, %p60
      %p62 = scmp.ne.s32.totalorder %s54, %s56
      %p63 = scmp.eq.s32.totalorder %s25, 1
      %p64 = por %p62, %p63
      %p65 = scmp.ne.s32.totalorder %s56, %s57
      %p66 = scmp.eq.s32.totalorder %s25, 0
      %p67 = por %p65, %p66
      %p68 = scmp.ne.s32.totalorder %s56, %s57
      %p69 = scmp.eq.s32.totalorder %s26, 1
      %p70 = por %p68, %p69
      %p72 = scmp.ne.s32.totalorder %s57, %s71
      %p73 = scmp.eq.s32.totalorder %s26, 0
      %p74 = por %p72, %p73
      %s76 = sadd.s32 %s75, 1
      %p79 = scmp.eq.s32.totalorder %s20, 1
      %p80 = scmp.ne.s32.totalorder %s75, %s77
      %p81 = scmp.eq.s32.totalorder %s20, 0
      %p82 = por %p80, %p81
      %p83 = scmp.ne.s32.totalorder %s75, %s77
      %p84 = scmp.eq.s32.totalorder %s25, 1
      %p85 = por %p83, %p84
      %p86 = scmp.ne.s32.totalorder %s77, %s78
      %p87 = scmp.eq.s32.totalorder %s25, 0
      %p88 = por %p86, %p87
      %p89 = scmp.ne.s32.totalorder %s77, %s78
      %p90 = scmp.eq.s32.totalorder %s26, 1
      %p91 = por %p89, %p90
      %p93 = scmp.ne.s32.totalorder %s78, %s92
      %p94 = scmp.eq.s32.totalorder %s26, 0
      %p95 = por %p93, %p94
      %s97 = sadd.s32 %s96, 1
      %p100 = scmp.eq.s32.totalorder %s20, 1
      %p101 = scmp.ne.s32.totalorder %s96, %s98
      %p102 = scmp.eq.s32.totalorder %s20, 0
      %p103 = por %p101, %p102
      %p104 = scmp.ne.s32.totalorder %s96, %s98
      %p105 = scmp.eq.s32.totalorder %s25, 1
      %p106 = por %p104, %p105
      %p107 = scmp.ne.s32.totalorder %s98, %s99
      %p108 = scmp.eq.s32.totalorder %s25, 0
      %p109 = por %p107, %p108
      %p110 = scmp.ne.s32.totalorder %s98, %s99
      %p111 = scmp.eq.s32.totalorder %s26, 1
      %p112 = por %p110, %p111
      %p114 = scmp.ne.s32.totalorder %s99, %s113
      %p115 = scmp.eq.s32.totalorder %s26, 0
      %p116 = por %p114, %p115
      %s118 = sadd.s32 %s117, 1
      %p121 = scmp.eq.s32.totalorder %s20, 1
      %p122 = scmp.ne.s32.totalorder %s117, %s119
      %p123 = scmp.eq.s32.totalorder %s20, 0
      %p124 = por %p122, %p123
      %p125 = scmp.ne.s32.totalorder %s117, %s119
      %p126 = scmp.eq.s32.totalorder %s25, 1
      %p127 = por %p125, %p126
      %p128 = scmp.ne.s32.totalorder %s119, %s120
      %p129 = scmp.eq.s32.totalorder %s25, 0
      %p130 = por %p128, %p129
      %p131 = scmp.ne.s32.totalorder %s119, %s120
      %p132 = scmp.eq.s32.totalorder %s26, 1
      %p133 = por %p131, %p132
      %p135 = scmp.ne.s32.totalorder %s120, %s134
      %p136 = scmp.eq.s32.totalorder %s26, 0
      %p137 = por %p135, %p136
      %s139 = sadd.s32 %s138, 1
      %p142 = scmp.eq.s32.totalorder %s20, 1
      %p143 = scmp.ne.s32.totalorder %s138, %s140
      %p144 = scmp.eq.s32.totalorder %s20, 0
      %p145 = por %p143, %p144
      %p146 = scmp.ne.s32.totalorder %s138, %s140
      %p147 = scmp.eq.s32.totalorder %s25, 1
      %p148 = por %p146, %p147
      %p149 = scmp.ne.s32.totalorder %s140, %s141
      %p150 = scmp.eq.s32.totalorder %s25, 0
      %p151 = por %p149, %p150
      %p152 = scmp.ne.s32.totalorder %s140, %s141
      %p153 = scmp.eq.s32.totalorder %s26, 1
      %p154 = por %p152, %p153
      %p156 = scmp.ne.s32.totalorder %s141, %s155
      %p157 = scmp.eq.s32.totalorder %s26, 0
      %p158 = por %p156, %p157
      %s160 = sadd.s32 %s159, 1
      %p163 = scmp.eq.s32.totalorder %s20, 1
      %p164 = scmp.ne.s32.totalorder %s159, %s161
      %p165 = scmp.eq.s32.totalorder %s20, 0
      %p166 = por %p164, %p165
      %p167 = scmp.ne.s32.totalorder %s159, %s161
      %p168 = scmp.eq.s32.totalorder %s25, 1
      %p169 = por %p167, %p168
      %p170 = scmp.ne.s32.totalorder %s161, %s162
      %p171 = scmp.eq.s32.totalorder %s25, 0
      %p172 = por %p170, %p171
      %p173 = scmp.ne.s32.totalorder %s161, %s162
      %p174 = scmp.eq.s32.totalorder %s26, 1
      %p175 = por %p173, %p174
      %p177 = scmp.ne.s32.totalorder %s162, %s176
      %p178 = scmp.eq.s32.totalorder %s26, 0
      %p179 = por %p177, %p178
      %s181 = sadd.s32 %s180, 1
      %p184 = scmp.eq.s32.totalorder %s20, 1
      %p185 = scmp.ne.s32.totalorder %s180, %s182
      %p186 = scmp.eq.s32.totalorder %s20, 0
      %p187 = por %p185, %p186
      %p188 = scmp.ne.s32.totalorder %s180, %s182
      %p189 = scmp.eq.s32.totalorder %s25, 1
      %p190 = por %p188, %p189
      %p191 = scmp.ne.s32.totalorder %s182, %s183
      %p192 = scmp.eq.s32.totalorder %s25, 0
      %p193 = por %p191, %p192
      %p194 = scmp.ne.s32.totalorder %s182, %s183
      %p195 = scmp.eq.s32.totalorder %s26, 1
      %p196 = por %p194, %p195
      %p198 = scmp.ne.s32.totalorder %s183, %s197
      %p199 = scmp.eq.s32.totalorder %s26, 0
      %p200 = por %p198, %p199
      %s202 = sadd.s32 %s201, 1
      %p205 = scmp.eq.s32.totalorder %s20, 1
      %p206 = scmp.ne.s32.totalorder %s201, %s203
      %p207 = scmp.eq.s32.totalorder %s20, 0
      %p208 = por %p206, %p207
      %p209 = scmp.ne.s32.totalorder %s201, %s203
      %p210 = scmp.eq.s32.totalorder %s25, 1
      %p211 = por %p209, %p210
      %p212 = scmp.ne.s32.totalorder %s203, %s204
      %p213 = scmp.eq.s32.totalorder %s25, 0
      %p214 = por %p212, %p213
      %p215 = scmp.ne.s32.totalorder %s203, %s204
      %p216 = scmp.eq.s32.totalorder %s26, 1
      %p217 = por %p215, %p216
      %p219 = scmp.ne.s32.totalorder %s204, %s218
      %p220 = scmp.eq.s32.totalorder %s26, 0
      %p221 = por %p219, %p220
      %s222 = ssub.s32 %s20, %s27
      %p223 = scmp.eq.s32.totalorder %s222, 0
      %s225 = sadd.s32 %s224, 1
      %s226 = scalar_select %p223, %s224, %s225
      %p229 = pneg %p223
      %p230 = scmp.eq.s32.totalorder %s20, 1
      %p231 = por %p229, %p230
      %p232 = scmp.ne.s32.totalorder %s224, %s227
      %p233 = scmp.eq.s32.totalorder %s20, 0
      %p234 = por %p232, %p233
      %p235 = scmp.ne.s32.totalorder %s224, %s227
      %p236 = scmp.eq.s32.totalorder %s25, 1
      %p237 = por %p235, %p236
      %p238 = scmp.ne.s32.totalorder %s227, %s228
      %p239 = scmp.eq.s32.totalorder %s25, 0
      %p240 = por %p238, %p239
      %p241 = scmp.ne.s32.totalorder %s227, %s228
      %p242 = scmp.eq.s32.totalorder %s26, 1
      %p243 = por %p241, %p242
      %p245 = scmp.ne.s32.totalorder %s228, %s244
      %p246 = scmp.eq.s32.totalorder %s26, 0
      %p247 = por %p245, %p246
      %p248 = scmp.le.s32.totalorder 1, %s20
      %p249 = scmp.lt.s32.totalorder %s20, 3
      %p250 = pnand %p248, %p249
      %p251 = pneg %p250
      // Predicated region
      $region9: #{tpu_custom_call.1} parent=5 // pred_check
        _
      $region10: #{tpu_custom_call.1} parent=5 // pred_check_branch
        %253 = sbr.rel (%p250) target = $region12
      $region11: #{tpu_custom_call.1} parent=5 // pred_region
        %s254 = ssub.s32 %s20, 1
        // Predicated region
        $region13: #{tpu_custom_call.1} parent=11 // pred_check
          %p255 = pneg %p67
        $region14: #{tpu_custom_call.1} parent=11 // pred_check_branch
          %257 = sbr.rel (%p255) target = $region16
        $region15: #{tpu_custom_call.1} parent=11 // pred_region
          _
        $region16: #{tpu_custom_call.1} parent=11 // pred_fallthru
          _
        // Predicated region
        $region17: #{tpu_custom_call.1} parent=11 // pred_check
          %p258 = pneg %p88
        $region18: #{tpu_custom_call.1} parent=11 // pred_check_branch
          %260 = sbr.rel (%p258) target = $region20
        $region19: #{tpu_custom_call.1} parent=11 // pred_region
          _
        $region20: #{tpu_custom_call.1} parent=11 // pred_fallthru
          _
        // Predicated region
        $region21: #{tpu_custom_call.1} parent=11 // pred_check
          %p261 = pneg %p109
        $region22: #{tpu_custom_call.1} parent=11 // pred_check_branch
          %263 = sbr.rel (%p261) target = $region24
        $region23: #{tpu_custom_call.1} parent=11 // pred_region
          _
        $region24: #{tpu_custom_call.1} parent=11 // pred_fallthru
          _
        // Predicated region
        $region25: #{tpu_custom_call.1} parent=11 // pred_check
          %p264 = pneg %p130
        $region26: #{tpu_custom_call.1} parent=11 // pred_check_branch
          %266 = sbr.rel (%p264) target = $region28
        $region27: #{tpu_custom_call.1} parent=11 // pred_region
          _
        $region28: #{tpu_custom_call.1} parent=11 // pred_fallthru
          _
        // Predicated region
        $region29: #{tpu_custom_call.1} parent=11 // pred_check
          %p267 = pneg %p151
        $region30: #{tpu_custom_call.1} parent=11 // pred_check_branch
          %269 = sbr.rel (%p267) target = $region32
        $region31: #{tpu_custom_call.1} parent=11 // pred_region
          _
        $region32: #{tpu_custom_call.1} parent=11 // pred_fallthru
          _
        // Predicated region
        $region33: #{tpu_custom_call.1} parent=11 // pred_check
          %p270 = pneg %p172
        $region34: #{tpu_custom_call.1} parent=11 // pred_check_branch
          %272 = sbr.rel (%p270) target = $region36
        $region35: #{tpu_custom_call.1} parent=11 // pred_region
          _
        $region36: #{tpu_custom_call.1} parent=11 // pred_fallthru
          _
        // Predicated region
        $region37: #{tpu_custom_call.1} parent=11 // pred_check
          %p273 = pneg %p193
        $region38: #{tpu_custom_call.1} parent=11 // pred_check_branch
          %275 = sbr.rel (%p273) target = $region40
        $region39: #{tpu_custom_call.1} parent=11 // pred_region
          _
        $region40: #{tpu_custom_call.1} parent=11 // pred_fallthru
          _
        // Predicated region
        $region41: #{tpu_custom_call.1} parent=11 // pred_check
          %p276 = pneg %p214
        $region42: #{tpu_custom_call.1} parent=11 // pred_check_branch
          %278 = sbr.rel (%p276) target = $region44
        $region43: #{tpu_custom_call.1} parent=11 // pred_region
          _
        $region44: #{tpu_custom_call.1} parent=11 // pred_fallthru
          _
      $region12: #{tpu_custom_call.1} parent=5 // pred_fallthru
        _
      %p279 = scmp.lt.s32.totalorder %s20, 2
      // Predicated region
      $region45: #{tpu_custom_call.1} parent=5 // pred_check
        %p280 = pneg %p279
      $region46: #{tpu_custom_call.1} parent=5 // pred_check_branch
        %282 = sbr.rel (%p280) target = $region48
      $region47: #{tpu_custom_call.1} parent=5 // pred_region
        // Predicated region
        $region49: #{tpu_custom_call.1} parent=47 // pred_check
          %p283 = pneg %p40
        $region50: #{tpu_custom_call.1} parent=47 // pred_check_branch
          %285 = sbr.rel (%p283) target = $region52
        $region51: #{tpu_custom_call.1} parent=47 // pred_region
          %s286 = smul.u32 8, %s20
          %s287 = ssub.s32 13, %s286
          %p288 = scmp.lt.s32.totalorder %s287, 8
          %s289 = scalar_select %p288, %s287, 8
          %s290 = smul.u32 8, %s289
          %p291 = scmp.lt.s32.totalorder %s286, 12
          %s292 = scalar_select %p291, %s286, 12
          %s293 = smul.addr %s292, 8
          %s294 = scalar_lea.vmem %s0, %s293
          %s295 = smul.u32 8, %s20
          %s296 = ssub.s32 13, %s295
          %p297 = scmp.lt.s32.totalorder %s296, 8
          %s298 = scalar_select %p297, %s296, 8
          %s299 = smul.u32 8, %s298
        $region52: #{tpu_custom_call.1} parent=47 // pred_fallthru
          _
      $region48: #{tpu_custom_call.1} parent=5 // pred_fallthru
        _
      %p300 = scmp.le.s32.totalorder 1, %s20
      %p301 = scmp.lt.s32.totalorder %s20, 3
      %p302 = pnand %p300, %p301
      %p303 = pneg %p302
      // Predicated region
      $region53: #{tpu_custom_call.1} parent=5 // pred_check
        _
      $region54: #{tpu_custom_call.1} parent=5 // pred_check_branch
        %305 = sbr.rel (%p302) target = $region56
      $region55: #{tpu_custom_call.1} parent=5 // pred_region
        %s306 = ssub.s32 %s20, 1
        %s307 = smul.u32 8, %s25
        %s308 = ssub.s32 13, %s307
        %p309 = scmp.lt.s32.totalorder %s308, 8
        %s310 = scalar_select %p309, %s308, 8
        %s311 = smul.u32 8, %s310
        %p312 = scmp.lt.s32.totalorder %s307, 12
        %s313 = scalar_select %p312, %s307, 12
        %s314 = smul.addr %s313, 8
        %s315 = scalar_lea.vmem %s0, %s314
        %p316 = pneg %p46
        %p317 = pneg %p43
        %p318 = pneg %p67
        %p319 = pneg %p64
        %p320 = pneg %p88
        %p321 = pneg %p85
        %p322 = pneg %p109
        %p323 = pneg %p106
        %p324 = pneg %p130
        %p325 = pneg %p127
        %p326 = pneg %p151
        %p327 = pneg %p148
        %p328 = pneg %p172
        %p329 = pneg %p169
        %p330 = pneg %p193
        %p331 = pneg %p190
        %p332 = pneg %p214
        %p333 = pneg %p211
        %p334 = pneg %p240
        %p335 = pneg %p237
        %s336 = sand.u32 %s227, 1
        %s337 = scalar_lea.sflag [#allocation4], %s336
        %s338 = sand.u32 %s227, 1
        %s339 = scalar_lea.vmem [#allocation3], %s338
        %s340 = smul.u32 8, %s25
        %s341 = ssub.s32 13, %s340
        %p342 = scmp.lt.s32.totalorder %s341, 8
        %s343 = scalar_select %p342, %s341, 8
        %s344 = smul.u32 8, %s343
        %p345 = scmp.lt.s32.totalorder %s340, 12
        %s346 = scalar_select %p345, %s340, 12
        %s347 = smul.addr %s346, 8
        %s348 = scalar_lea.vmem %s0, %s347
        %s349 = smul.u32 8, %s25
        %s350 = ssub.s32 13, %s349
        %p351 = scmp.lt.s32.totalorder %s350, 8
        %s352 = scalar_select %p351, %s350, 8
        %s353 = smul.u32 8, %s352
        %v354 = vld [vmem:[%s348] sm:$0xff]
        %v355 = vld [vmem:[%s348 + $0x8] sm:$0xff]
        %v356 = vld [vmem:[%s348 + $0x10] sm:$0xff]
        %v357 = vld [vmem:[%s348 + $0x18] sm:$0xff]
        %v358 = vld [vmem:[%s348 + $0x20] sm:$0xff]
        %v359 = vld [vmem:[%s348 + $0x28] sm:$0xff]
        %v360 = vld [vmem:[%s348 + $0x30] sm:$0xff]
        %v361 = vld [vmem:[%s348 + $0x38] sm:$0xff]
        %v362 = vld [vmem:[%s1] sm:$0xff]
        %v363 = vld [vmem:[%s1 + $0x8] sm:$0xff]
        %v364 = vld [vmem:[%s1 + $0x10] sm:$0xf]
        %v365 = vld [vmem:[%s2] sm:$0x1]
        %v367 = vperm.slane %v365, 0
        %vm369 = vcmask 162816
        %v371 = vsel %vm369, %v354, 0
        %v374 = vsel %vm369, %v355, 0
        %v377 = vsel %vm369, %v356, 0
        %v380 = vsel %vm369, %v357, 0
        %v383 = vsel %vm369, %v358, 0
        %v386 = vsel %vm369, %v359, 0
        %v389 = vsel %vm369, %v360, 0
        %v392 = vsel %vm369, %v361, 0
        %vm394 = vcmask 1043456
        %v396 = vsel %vm394, %v364, 0
        %398 = vmatpush.msra.mxu0 0.0
        %399 = vmatpush.msra.mxu0 0.0
        %400 = vmatpush.msra.mxu0 0.0
        %401 = vmatpush.msra.mxu0 0.0
        %402 = vmatpush.msra.mxu0 0.0
        %403 = vmatpush.msra.mxu0 0.0
        %404 = vmatpush.msra.mxu0 0.0
        %405 = vmatpush.msra.mxu0 0.0
        %406 = vmatpush.msra.mxu0 0.0
        %407 = vmatpush.msra.mxu0 0.0
        %408 = vmatpush.msra.mxu0 0.0
        %409 = vmatpush.msra.mxu0 0.0
        %410 = vmatpush.msra.mxu0 0.0
        %411 = vmatpush.msra.mxu0 %v396
        %412 = vmatpush.msra.mxu0 %v363
        %413 = vmatpush.msra.mxu0 %v362
        %414 = vmatmul.f32.gmra.mxu0 %v371
        %v415 = vpop.f32.mrf.mxu0
        %v416 = vadd.f32 %v367, %v415
        %417 = vmatmul.f32.gmra.mxu0 %v374
        %v418 = vpop.f32.mrf.mxu0
        %v419 = vadd.f32 %v367, %v418
        %420 = vmatmul.f32.gmra.mxu0 %v377
        %v421 = vpop.f32.mrf.mxu0
        %v422 = vadd.f32 %v367, %v421
        %423 = vmatmul.f32.gmra.mxu0 %v380
        %v424 = vpop.f32.mrf.mxu0
        %v425 = vadd.f32 %v367, %v424
        %426 = vmatmul.f32.gmra.mxu0 %v383
        %v427 = vpop.f32.mrf.mxu0
        %v428 = vadd.f32 %v367, %v427
        %429 = vmatmul.f32.gmra.mxu0 %v386
        %v430 = vpop.f32.mrf.mxu0
        %v431 = vadd.f32 %v367, %v430
        %432 = vmatmul.f32.gmra.mxu0 %v389
        %v433 = vpop.f32.mrf.mxu0
        %v434 = vadd.f32 %v367, %v433
        %435 = vmatmul.f32.gmra.mxu0 %v392
        %v436 = vpop.f32.mrf.mxu0
        %v437 = vadd.f32 %v367, %v436
        %438 = vdwg.mxu0
        %v439 = vmax.f32 %v416, 0.0
        %v440 = vmax.f32 %v419, 0.0
        %v441 = vmax.f32 %v422, 0.0
        %v442 = vmax.f32 %v425, 0.0
        %v443 = vmax.f32 %v428, 0.0
        %v444 = vmax.f32 %v431, 0.0
        %v445 = vmax.f32 %v434, 0.0
        %v446 = vmax.f32 %v437, 0.0
        %v447 = vld [vmem:[%s3] sm:$0xff]
        %v448 = vld [vmem:[%s3 + $0x8] sm:$0xff]
        %v449 = vld [vmem:[%s3 + $0x10] sm:$0xff]
        %v450 = vld [vmem:[%s3 + $0x18] sm:$0xff]
        %v451 = vld [vmem:[%s4] sm:$0x1]
        %v453 = vperm.slane %v451, 0
        %vm455 = vcmask 261120
        %v457 = vsel %vm455, %v439, 0
        %v460 = vsel %vm455, %v440, 0
        %v463 = vsel %vm455, %v441, 0
        %v466 = vsel %vm455, %v442, 0
        %v469 = vsel %vm455, %v443, 0
        %v472 = vsel %vm455, %v444, 0
        %v475 = vsel %vm455, %v445, 0
        %v478 = vsel %vm455, %v446, 0
        %480 = vmatpush.msra.mxu0 0.0
        %481 = vmatpush.msra.mxu0 0.0
        %482 = vmatpush.msra.mxu0 0.0
        %483 = vmatpush.msra.mxu0 0.0
        %484 = vmatpush.msra.mxu0 0.0
        %485 = vmatpush.msra.mxu0 0.0
        %486 = vmatpush.msra.mxu0 0.0
        %487 = vmatpush.msra.mxu0 0.0
        %488 = vmatpush.msra.mxu0 0.0
        %489 = vmatpush.msra.mxu0 0.0
        %490 = vmatpush.msra.mxu0 0.0
        %491 = vmatpush.msra.mxu0 0.0
        %492 = vmatpush.msra.mxu0 %v450
        %493 = vmatpush.msra.mxu0 %v449
        %494 = vmatpush.msra.mxu0 %v448
        %495 = vmatpush.msra.mxu0 %v447
        %496 = vmatmul.f32.gmra.mxu0 %v457
        %v497 = vpop.f32.mrf.mxu0
        %v498 = vadd.f32 %v453, %v497
        %499 = vmatmul.f32.gmra.mxu0 %v460
        %v500 = vpop.f32.mrf.mxu0
        %v501 = vadd.f32 %v453, %v500
        %502 = vmatmul.f32.gmra.mxu0 %v463
        %v503 = vpop.f32.mrf.mxu0
        %v504 = vadd.f32 %v453, %v503
        %505 = vmatmul.f32.gmra.mxu0 %v466
        %v506 = vpop.f32.mrf.mxu0
        %v507 = vadd.f32 %v453, %v506
        %508 = vmatmul.f32.gmra.mxu0 %v469
        %v509 = vpop.f32.mrf.mxu0
        %v510 = vadd.f32 %v453, %v509
        %511 = vmatmul.f32.gmra.mxu0 %v472
        %v512 = vpop.f32.mrf.mxu0
        %v513 = vadd.f32 %v453, %v512
        %514 = vmatmul.f32.gmra.mxu0 %v475
        %v515 = vpop.f32.mrf.mxu0
        %v516 = vadd.f32 %v453, %v515
        %517 = vmatmul.f32.gmra.mxu0 %v478
        %v518 = vpop.f32.mrf.mxu0
        %v519 = vadd.f32 %v453, %v518
        %520 = vdwg.mxu0
        %v521 = vmax.f32 %v498, 0.0
        %v522 = vmax.f32 %v501, 0.0
        %v523 = vmax.f32 %v504, 0.0
        %v524 = vmax.f32 %v507, 0.0
        %v525 = vmax.f32 %v510, 0.0
        %v526 = vmax.f32 %v513, 0.0
        %v527 = vmax.f32 %v516, 0.0
        %v528 = vmax.f32 %v519, 0.0
        %v529 = vld [vmem:[%s5] sm:$0xff]
        %v530 = vld [vmem:[%s5 + $0x8] sm:$0xff]
        %v531 = vld [vmem:[%s6] sm:$0x1]
        %v533 = vperm.slane %v531, 0
        %vm535 = vcmask 130048
        %v537 = vsel %vm535, %v521, 0
        %v540 = vsel %vm535, %v522, 0
        %v543 = vsel %vm535, %v523, 0
        %v546 = vsel %vm535, %v524, 0
        %v549 = vsel %vm535, %v525, 0
        %v552 = vsel %vm535, %v526, 0
        %v555 = vsel %vm535, %v527, 0
        %v558 = vsel %vm535, %v528, 0
        %560 = vmatpush.msra.mxu0 0.0
        %561 = vmatpush.msra.mxu0 0.0
        %562 = vmatpush.msra.mxu0 0.0
        %563 = vmatpush.msra.mxu0 0.0
        %564 = vmatpush.msra.mxu0 0.0
        %565 = vmatpush.msra.mxu0 0.0
        %566 = vmatpush.msra.mxu0 0.0
        %567 = vmatpush.msra.mxu0 0.0
        %568 = vmatpush.msra.mxu0 0.0
        %569 = vmatpush.msra.mxu0 0.0
        %570 = vmatpush.msra.mxu0 0.0
        %571 = vmatpush.msra.mxu0 0.0
        %572 = vmatpush.msra.mxu0 0.0
        %573 = vmatpush.msra.mxu0 0.0
        %574 = vmatpush.msra.mxu0 %v530
        %575 = vmatpush.msra.mxu0 %v529
        %576 = vmatmul.f32.gmra.mxu0 %v537
        %v577 = vpop.f32.mrf.mxu0
        %v578 = vadd.f32 %v533, %v577
        %579 = vmatmul.f32.gmra.mxu0 %v540
        %v580 = vpop.f32.mrf.mxu0
        %v581 = vadd.f32 %v533, %v580
        %582 = vmatmul.f32.gmra.mxu0 %v543
        %v583 = vpop.f32.mrf.mxu0
        %v584 = vadd.f32 %v533, %v583
        %585 = vmatmul.f32.gmra.mxu0 %v546
        %v586 = vpop.f32.mrf.mxu0
        %v587 = vadd.f32 %v533, %v586
        %588 = vmatmul.f32.gmra.mxu0 %v549
        %v589 = vpop.f32.mrf.mxu0
        %v590 = vadd.f32 %v533, %v589
        %591 = vmatmul.f32.gmra.mxu0 %v552
        %v592 = vpop.f32.mrf.mxu0
        %v593 = vadd.f32 %v533, %v592
        %594 = vmatmul.f32.gmra.mxu0 %v555
        %v595 = vpop.f32.mrf.mxu0
        %v596 = vadd.f32 %v533, %v595
        %597 = vmatmul.f32.gmra.mxu0 %v558
        %v598 = vpop.f32.mrf.mxu0
        %v599 = vadd.f32 %v533, %v598
        %600 = vdwg.mxu0
        %v601 = vmax.f32 %v578, 0.0
        %v602 = vmax.f32 %v581, 0.0
        %v603 = vmax.f32 %v584, 0.0
        %v604 = vmax.f32 %v587, 0.0
        %v605 = vmax.f32 %v590, 0.0
        %v606 = vmax.f32 %v593, 0.0
        %v607 = vmax.f32 %v596, 0.0
        %v608 = vmax.f32 %v599, 0.0
        %v609 = vld [vmem:[%s7] sm:$0xff]
        %vm610 = vcmask 64512
        %v612 = vsel %vm610, %v601, 0
        %v615 = vsel %vm610, %v602, 0
        %v618 = vsel %vm610, %v603, 0
        %v621 = vsel %vm610, %v604, 0
        %v624 = vsel %vm610, %v605, 0
        %v627 = vsel %vm610, %v606, 0
        %v630 = vsel %vm610, %v607, 0
        %v633 = vsel %vm610, %v608, 0
        %635 = vmatpush.msra.mxu0 0.0
        %636 = vmatpush.msra.mxu0 0.0
        %637 = vmatpush.msra.mxu0 0.0
        %638 = vmatpush.msra.mxu0 0.0
        %639 = vmatpush.msra.mxu0 0.0
        %640 = vmatpush.msra.mxu0 0.0
        %641 = vmatpush.msra.mxu0 0.0
        %642 = vmatpush.msra.mxu0 0.0
        %643 = vmatpush.msra.mxu0 0.0
        %644 = vmatpush.msra.mxu0 0.0
        %645 = vmatpush.msra.mxu0 0.0
        %646 = vmatpush.msra.mxu0 0.0
        %647 = vmatpush.msra.mxu0 0.0
        %648 = vmatpush.msra.mxu0 0.0
        %649 = vmatpush.msra.mxu0 0.0
        %650 = vmatpush.msra.mxu0 %v609
        %651 = vmatmul.f32.gmra.mxu0 %v612
        %v652 = vpop.f32.mrf.mxu0
        %v653 = vadd.f32 0.0, %v652
        %654 = vmatmul.f32.gmra.mxu0 %v615
        %v655 = vpop.f32.mrf.mxu0
        %v656 = vadd.f32 0.0, %v655
        %657 = vmatmul.f32.gmra.mxu0 %v618
        %v658 = vpop.f32.mrf.mxu0
        %v659 = vadd.f32 0.0, %v658
        %660 = vmatmul.f32.gmra.mxu0 %v621
        %v661 = vpop.f32.mrf.mxu0
        %v662 = vadd.f32 0.0, %v661
        %663 = vmatmul.f32.gmra.mxu0 %v624
        %v664 = vpop.f32.mrf.mxu0
        %v665 = vadd.f32 0.0, %v664
        %666 = vmatmul.f32.gmra.mxu0 %v627
        %v667 = vpop.f32.mrf.mxu0
        %v668 = vadd.f32 0.0, %v667
        %669 = vmatmul.f32.gmra.mxu0 %v630
        %v670 = vpop.f32.mrf.mxu0
        %v671 = vadd.f32 0.0, %v670
        %672 = vmatmul.f32.gmra.mxu0 %v633
        %v673 = vpop.f32.mrf.mxu0
        %v674 = vadd.f32 0.0, %v673
        %675 = vdwg.mxu0
        %676 = vxpose.xlu0.b32.start [1/16] %v653, 128
        %677 = vxpose.xlu0.b32.cont [2/16] %v656, 128
        %678 = vxpose.xlu0.b32.cont [3/16] %v659, 128
        %679 = vxpose.xlu0.b32.cont [4/16] %v662, 128
        %680 = vxpose.xlu0.b32.cont [5/16] %v665, 128
        %681 = vxpose.xlu0.b32.cont [6/16] %v668, 128
        %682 = vxpose.xlu0.b32.cont [7/16] %v671, 128
        %683 = vxpose.xlu0.b32.cont [8/16] %v674, 128
        %684 = vxpose.xlu0.b32.cont [9/16] 0.0, 128
        %685 = vxpose.xlu0.b32.cont [10/16] 0.0, 128
        %686 = vxpose.xlu0.b32.cont [11/16] 0.0, 128
        %687 = vxpose.xlu0.b32.cont [12/16] 0.0, 128
        %688 = vxpose.xlu0.b32.cont [13/16] 0.0, 128
        %689 = vxpose.xlu0.b32.cont [14/16] 0.0, 128
        %690 = vxpose.xlu0.b32.cont [15/16] 0.0, 128
        %691 = vxpose.xlu0.b32.end [16/16] 0.0, 128
        %v692 = vpop.trf.xlu0
        %v693 = vpop.trf.xlu0
        %v694 = vpop.trf.xlu0
        %v695 = vpop.trf.xlu0
        %v696 = vpop.trf.xlu0
        %v697 = vpop.trf.xlu0
        %v698 = vpop.trf.xlu0
        %v699 = vpop.trf.xlu0
        %v700 = vpop.trf.xlu0
        %v701 = vpop.trf.xlu0
        %v702 = vpop.trf.xlu0
        %v703 = vpop.trf.xlu0
        %v704 = vpop.trf.xlu0
        %v705 = vpop.trf.xlu0
        %v706 = vpop.trf.xlu0
        %v707 = vpop.trf.xlu0
        %v708 = vld [vmem:[#allocation2] sm:$0x1]
        %710 = vset.pattern.permute.xlu0 0
        %711 = vperm.xlu0 %710, %v708
        %v712 = vpop.permute.xlu0 %711
        %v714 = vperm.slane %v712, 0
        %v715 = vadd.f32 %v692, %v714
        %vm716 = vcmask 516096
        %717 = vst.msk [vmem:[%s339] sm:$0x1] %vm716, %v715
        %s718 = sand.u32 %s227, 1
        %s719 = scalar_lea.sflag [#allocation4], %s718
        %s720 = sand.u32 %s227, 1
        %s721 = scalar_lea.vmem [#allocation3], %s720
        // Predicated region
        $region57: #{tpu_custom_call.1} parent=55 // pred_check
          %p722 = pneg %p237
        $region58: #{tpu_custom_call.1} parent=55 // pred_check_branch
          %724 = sbr.rel (%p722) target = $region60
        $region59: #{tpu_custom_call.1} parent=55 // pred_region
          %726 = vsyncadd %s719, 0
          %s727 = scalar_lea.hbm %s9, %s25
          %s729 = sshll.u32 %s721, 4
          %s730 = int_to_ptr.vmem [resolvable:$true] %s729
          %s731 = sshll.u32 %s727, 4
          %s732 = int_to_ptr.hbm [resolvable:$true] %s731
          %734 = dma.vmem_to_hbm [thread:$0]  %s730, 16, %s732, %s719
        $region60: #{tpu_custom_call.1} parent=55 // pred_fallthru
          _
      $region56: #{tpu_custom_call.1} parent=5 // pred_fallthru
        _
      %p735 = scmp.le.s32.totalorder 2, %s20
      // Predicated region
      $region61: #{tpu_custom_call.1} parent=5 // pred_check
        %p736 = pneg %p735
      $region62: #{tpu_custom_call.1} parent=5 // pred_check_branch
        %738 = sbr.rel (%p736) target = $region64
      $region63: #{tpu_custom_call.1} parent=5 // pred_region
        %s739 = ssub.s32 %s20, 2
        // Predicated region
        $region65: #{tpu_custom_call.1} parent=63 // pred_check
          %p740 = pneg %p243
        $region66: #{tpu_custom_call.1} parent=63 // pred_check_branch
          %742 = sbr.rel (%p740) target = $region68
        $region67: #{tpu_custom_call.1} parent=63 // pred_region
          %s743 = sand.u32 %s228, 1
          %s744 = scalar_lea.sflag [#allocation4], %s743
          %s745 = sand.u32 %s228, 1
          %s746 = scalar_lea.vmem [#allocation3], %s745
          %748 = dma.done %s744, 16
        $region68: #{tpu_custom_call.1} parent=63 // pred_fallthru
          _
      $region64: #{tpu_custom_call.1} parent=5 // pred_fallthru
        _
    $region6: #{tpu_custom_call.1} parent=1 // loop_footer
      %s24 = sadd.s32 1, %s20
    $region7: #{tpu_custom_call.1} parent=1 // loop_footer_branch
      %19 = sbr.rel target = $region3
    $region8: #{tpu_custom_call.1} parent=1 // loop_exit
      _
    %749 = vsyncpa [#allocation4], 1
    %s750 = scalar_lea.sflag [#allocation4], 1
    %751 = vsyncpa %s750, 1

</llo_original>
